<compile_context>
chip_gen: v7x
topology: tpu7x:2x2x1
jax: 0.10.0
libtpu: 0.0.40
codegen_flags: <defaults>
</compile_context>

<pallas_src>
import functools
import math

import jax
import jax.numpy as jnp
from jax.experimental import pallas as pl
from jax.experimental.pallas import tpu as pltpu


def _pos_emb_kernel(pos_ref, inv_ref, phase_ref, out_ref, *, tl, resident_pos):
    # pos_ref:   [L_pad, 1] (resident) or [tl, 1] (streamed)   float32
    # inv_ref:   [1, d_model] float32  (inv_freq duplicated across halves)
    # phase_ref: [1, d_model] float32  (0 for the sin half, pi/2 for cos half)
    # out_ref:   [tl, d_model] out_dtype
    if resident_pos:
        start = pl.multiple_of(pl.program_id(0) * tl, 8)
        pos = pos_ref[pl.ds(start, tl), :]          # [tl, 1]
    else:
        pos = pos_ref[...]                          # [tl, 1]
    # sin(x + pi/2) == cos(x): one VPU mul+add, one EUP sin pass, and a
    # single full-width lane-dense store (no masked half-width stores).
    arg = pos * inv_ref[...] + phase_ref[...]       # [tl, d_model]
    out_ref[...] = jnp.sin(arg).astype(out_ref.dtype)


def _block_budget_bytes():
    # Generation-aware per-block output budget (double-buffered by Pallas,
    # plus the f32 intermediates the kernel materializes).
    try:
        kind = jax.devices()[0].device_kind.lower()
    except Exception:
        kind = ""
    if ("v5 lite" in kind) or ("v5e" in kind) or ("v5lite" in kind):
        return 2 << 20   # v5e: 16 MiB default scoped VMEM — stay small
    if "v7" in kind:
        return 3 << 20   # v7x: 64 MiB physical / 32 MiB scoped
    return 4 << 20       # v6e / v5p / v4: plenty of headroom


def _choose_tile_l(L, d_model, out_bytes):
    budget = _block_budget_bytes()
    max_rows = max(8, budget // max(1, d_model * out_bytes))
    tl = min(L, max_rows)
    if L >= 16:
        # Guarantee >= 2 grid steps so 2-TensorCore parts (v7x) shard the
        # "parallel" grid axis; the extra ~0.35 us step is noise elsewhere.
        tl = min(tl, -(-L // 2))
    if L >= 8:
        tl = max(8, (tl // 8) * 8)   # sublane-aligned tile
    else:
        tl = L                        # tiny L: block == full array dim
    return tl


def _positional_embedding_pallas(pos_seq, inverse_freq, out_dtype):
    L = pos_seq.shape[0]
    d_half = inverse_freq.shape[0]
    d_model = 2 * d_half

    out_bytes = jnp.dtype(out_dtype).itemsize
    tl = _choose_tile_l(L, d_model, out_bytes)
    n_blocks = -(-L // tl)
    L_pad = n_blocks * tl

    pos_col = pos_seq.astype(jnp.float32).reshape(L, 1)
    if L_pad != L:
        # Pad to a whole number of tiles: no partial input blocks, and the
        # in-kernel pl.ds slice of the resident column never goes OOB.
        pos_col = jnp.pad(pos_col, ((0, L_pad - L), (0, 0)))

    inv_f32 = inverse_freq.astype(jnp.float32)
    inv_full = jnp.concatenate([inv_f32, inv_f32]).reshape(1, d_model)
    phase = jnp.concatenate(
        [jnp.zeros((d_half,), jnp.float32),
         jnp.full((d_half,), math.pi / 2, dtype=jnp.float32)]
    ).reshape(1, d_model)

    # A (N, 1) f32 column occupies ~N * 512 B of VMEM once (8,128)-tiled;
    # keep it fully resident only while that stays trivially small.
    resident_pos = (L_pad * 512) <= (2 << 20)
    if resident_pos:
        pos_spec = pl.BlockSpec((L_pad, 1), lambda i: (0, 0))
    else:
        pos_spec = pl.BlockSpec((tl, 1), lambda i: (i, 0))

    return pl.pallas_call(
        functools.partial(_pos_emb_kernel, tl=tl, resident_pos=resident_pos),
        out_shape=jax.ShapeDtypeStruct((L, d_model), out_dtype),
        grid_spec=pltpu.PrefetchScalarGridSpec(
            num_scalar_prefetch=0,
            grid=(n_blocks,),
            in_specs=[
                pos_spec,                                      # positions
                pl.BlockSpec((1, d_model), lambda i: (0, 0)),  # inv_full
                pl.BlockSpec((1, d_model), lambda i: (0, 0)),  # phase
            ],
            out_specs=pl.BlockSpec((tl, d_model), lambda i: (i, 0)),
        ),
        compiler_params=pltpu.CompilerParams(
            # L-tiles are independent: shard across TensorCores where present.
            dimension_semantics=("parallel",),
            # Explicit limit: raises v5e's 16 MiB default, matches v6e/v7x.
            vmem_limit_bytes=32 * 1024 * 1024,
        ),
    )(pos_col, inv_full, phase)


def positional_embedding(pos_seq, inverse_freq, batch_size=None,
                         out_dtype=jnp.float32, use_pallas=None):
    """Mirrors PostionalEmbedding.forward.

    pos_seq:      [L]        float
    inverse_freq: [d_half]   float  (d_half = d_model // 2)
    returns:      [L, 1, d_model]            if batch_size is None
                  [L, batch_size, d_model]   otherwise
    """
    L = pos_seq.shape[0]
    d_half = inverse_freq.shape[0]
    d_model = 2 * d_half

    if use_pallas is None:
        # Below ~64K output elements, custom-call + per-step overhead dominate;
        # XLA-fused sin/cos/concat is strictly faster.
        use_pallas = (L * d_model) >= 65536

    if use_pallas:
        pos_emb = _positional_embedding_pallas(pos_seq, inverse_freq, out_dtype)
    else:
        sinusoid = jnp.einsum("i,j->ij", pos_seq.astype(jnp.float32),
                              inverse_freq.astype(jnp.float32))
        pos_emb = jnp.concatenate(
            [jnp.sin(sinusoid), jnp.cos(sinusoid)], axis=-1).astype(out_dtype)

    pos_emb = pos_emb[:, None, :]  # [L, 1, d_model]
    if batch_size is not None:
        # torch .expand is a view; under jit this broadcast fuses with its
        # consumer rather than materializing an (L, batch, d_model) HBM array.
        pos_emb = jnp.broadcast_to(pos_emb, (L, batch_size, d_model))
    return pos_emb


def make_inverse_freq(d_model):
    # Matches: 1 / 10000 ** (torch.arange(0.0, d_model, 2.0) / d_model)
    return 1.0 / (10000.0 ** (jnp.arange(0.0, d_model, 2.0, dtype=jnp.float32)
                              / d_model))


if __name__ == "__main__":
    d_model = 32
    seq_len = 8
    batch = 2

    key = jax.random.PRNGKey(0)
    pos_seq = jax.random.uniform(key, (seq_len,), dtype=jnp.float32,
                                 minval=0.0, maxval=float(seq_len))
    inverse_freq = make_inverse_freq(d_model)

    # Force the Pallas path so the kernel itself is exercised at demo size
    # (the auto-dispatcher would route shapes this tiny to plain jnp).
    out = positional_embedding(pos_seq, inverse_freq, batch_size=batch,
                               use_pallas=True)
    out = jax.block_until_ready(out)

    # Pure-JAX reference (same math as the torch forward). Tolerance covers
    # the sin(x + pi/2) == cos(x) identity's ULP-level difference.
    sinusoid = jnp.einsum("i,j->ij", pos_seq, inverse_freq)
    ref = jnp.concatenate([jnp.sin(sinusoid), jnp.cos(sinusoid)], axis=-1)
    ref = jnp.broadcast_to(ref[:, None, :], (seq_len, batch, d_model))

    assert out.shape == (seq_len, batch, d_model)
    assert out.dtype == jnp.float32
    assert jnp.allclose(out, ref, atol=1e-5, rtol=1e-5)

    # Also sanity-check the no-batch path (shape [L, 1, d_model]).
    out_nb = jax.block_until_ready(
        positional_embedding(pos_seq, inverse_freq, use_pallas=True))
    assert out_nb.shape == (seq_len, 1, d_model)
    assert jnp.allclose(out_nb[:, 0, :], ref[:, 0, :], atol=1e-5, rtol=1e-5)

    print("KERNEL_OK")
</pallas_src>

<mosaic_0001>
module attributes {stable_mosaic.version = 11 : i64} {
  func.func @_pos_emb_kernel(%arg0: i32, %arg1: memref<8x1xf32, #tpu.memory_space<vmem>>, %arg2: memref<1x32xf32, #tpu.memory_space<vmem>>, %arg3: memref<1x32xf32, #tpu.memory_space<vmem>>, %arg4: memref<8x32xf32, #tpu.memory_space<vmem>>) attributes {dimension_semantics = [#tpu.dimension_semantics<parallel>], iteration_bounds = array<i64: 1>, scalar_prefetch = 0 : i64, scratch_operands = 0 : i64, tpu.core_type = #tpu.core_type<tc>, window_params = [{pipeline_mode = #tpu.pipeline_mode<synchronous>, transform_indices = @transform_0, window_bounds = array<i64: 8, 1>}, {pipeline_mode = #tpu.pipeline_mode<synchronous>, transform_indices = @transform_1, window_bounds = array<i64: 1, 32>}, {pipeline_mode = #tpu.pipeline_mode<synchronous>, transform_indices = @transform_2, window_bounds = array<i64: 1, 32>}, {transform_indices = @transform_3, window_bounds = array<i64: 8, 32>}]} {
    %c8_i32 = arith.constant 8 : i32
    %0 = arith.muli %arg0, %c8_i32 : i32
    %1 = tpu.assume_multiple %0, 8 : i32
    %2 = arith.index_cast %1 : i32 to index
    %c0 = arith.constant 0 : index
    %3 = vector.load %arg1[%2, %c0] : memref<8x1xf32, #tpu.memory_space<vmem>>, vector<8x1xf32>
    %c0_0 = arith.constant 0 : index
    %c0_1 = arith.constant 0 : index
    %4 = vector.load %arg2[%c0_0, %c0_1] : memref<1x32xf32, #tpu.memory_space<vmem>>, vector<1x32xf32>
    %5 = vector.broadcast %3 : vector<8x1xf32> to vector<8x32xf32>
    %6 = vector.broadcast %4 : vector<1x32xf32> to vector<8x32xf32>
    %7 = arith.mulf %5, %6 : vector<8x32xf32>
    %c0_2 = arith.constant 0 : index
    %c0_3 = arith.constant 0 : index
    %8 = vector.load %arg3[%c0_2, %c0_3] : memref<1x32xf32, #tpu.memory_space<vmem>>, vector<1x32xf32>
    %9 = vector.broadcast %8 : vector<1x32xf32> to vector<8x32xf32>
    %10 = arith.addf %7, %9 : vector<8x32xf32>
    %11 = math.sin %10 : vector<8x32xf32>
    %c0_4 = arith.constant 0 : index
    %c0_5 = arith.constant 0 : index
    %12 = vector.load %arg4[%c0_4, %c0_5] : memref<8x32xf32, #tpu.memory_space<vmem>>, vector<8x32xf32>
    tpu.vector_store %arg4[%c0_4, %c0_5], %11 {strides = array<i32>} : memref<8x32xf32, #tpu.memory_space<vmem>>, vector<8x32xf32>,
    return
  }
  func.func @transform_0(%arg0: i32) -> (i32, i32) {
    %c0_i32 = arith.constant 0 : i32
    %c0_i32_0 = arith.constant 0 : i32
    %c0_i32_1 = arith.constant 0 : i32
    return %c0_i32, %c0_i32_0 : i32, i32
  }
  func.func @transform_1(%arg0: i32) -> (i32, i32) {
    %c0_i32 = arith.constant 0 : i32
    %c0_i32_0 = arith.constant 0 : i32
    %c0_i32_1 = arith.constant 0 : i32
    return %c0_i32, %c0_i32_0 : i32, i32
  }
  func.func @transform_2(%arg0: i32) -> (i32, i32) {
    %c0_i32 = arith.constant 0 : i32
    %c0_i32_0 = arith.constant 0 : i32
    %c0_i32_1 = arith.constant 0 : i32
    return %c0_i32, %c0_i32_0 : i32, i32
  }
  func.func @transform_3(%arg0: i32) -> (i32, i32) {
    %c0_i32 = arith.constant 0 : i32
    %c0_i32_0 = arith.constant 0 : i32
    return %arg0, %c0_i32 : i32, i32
  }
}

</mosaic_0001>

<llo_original>
// kernel: tpu_custom_call.1
$region0: #{tpu_custom_call.1}
  #allocation0 [shape = 'u32[]', space=smem, size = 0x4, offset = 0x4, fixed_abs, tag = 'smem constant byte address 0x4 - core index']
  #allocation1 [shape = 'u32[144,128]{1,0:T(1,128)}', space=vmem, size = 0x12000, scoped, tag = 'internal scratch']
  %s0 = inlined_call_operand.vmem [shape: f32[8,1], index: 0, kind: input, shape index: {}]
  %s1 = inlined_call_operand.vmem [shape: f32[1,32], index: 1, kind: input, shape index: {}]
  %s2 = inlined_call_operand.vmem [shape: f32[1,32], index: 2, kind: input, shape index: {}]
  %s3 = inlined_call_operand.hbm [shape: f32[8,32], index: 3, kind: output, shape index: {}]
  %s4 = sld [smem:[#allocation0]]
  $region22: #{tpu_custom_call.1} parent=0
    _
  %s6 = ssub.s32 1, %s4
  %s7 = scalar_select 0, %s6, %s4
  $region1: #{tpu_custom_call.1} parent=0
    #allocation2 [shape = 'u8[4096]{0}', space=vmem, size = 0x1000, scoped, tag = 'output window, operand 0, single buffered']
    #allocation3 [shape = 's32[1]{0}', space=sflag, size = 0x4, scoped, tag = 'scoped memory for tpu_custom_call.1']
    %8 = vsyncpa [#allocation3], 0
    // Predicated region
    $region2: #{tpu_custom_call.1} parent=1 // pred_check
      _
    $region3: #{tpu_custom_call.1} parent=1 // pred_check_branch
      %10 = sbr.rel (0) target = $region5
    $region4: #{tpu_custom_call.1} parent=1 // pred_region
      _
    $region5: #{tpu_custom_call.1} parent=1 // pred_fallthru
      _
    // Predicated region
    $region6: #{tpu_custom_call.1} parent=1 // pred_check
      _
    $region7: #{tpu_custom_call.1} parent=1 // pred_check_branch
      %12 = sbr.rel (0) target = $region9
    $region8: #{tpu_custom_call.1} parent=1 // pred_region
      _
    $region9: #{tpu_custom_call.1} parent=1 // pred_fallthru
      _
    // Predicated region
    $region10: #{tpu_custom_call.1} parent=1 // pred_check
      _
    $region11: #{tpu_custom_call.1} parent=1 // pred_check_branch
      %14 = sbr.rel (0) target = $region13
    $region12: #{tpu_custom_call.1} parent=1 // pred_region
      _
    $region13: #{tpu_custom_call.1} parent=1 // pred_fallthru
      _
    %s15 = smul.u32 0, 8
    %s16 = scalar_lea.vmem %s0, %s15
    %v17 = vld [vmem:[%s16] sm:$0xff]
    %v18 = vld [vmem:[%s1] sm:$0x1]
    %20 = vset.pattern.permute.xlu0 0
    %21 = vperm.xlu0 %20, %v17
    %v22 = vpop.permute.xlu0 %21
    %v25 = vlaneseq
    %v26 = vshrl.u32 %v25, 7
    %v27 = vsub.s32 0, %v26
    %v28 = vrot.slane %v18, %v27
    %v30 = vmul.f32 %v22, %v28
    %v31 = vld [vmem:[%s2] sm:$0x1]
    %v33 = vlaneseq
    %v34 = vshrl.u32 %v33, 7
    %v35 = vsub.s32 0, %v34
    %v36 = vrot.slane %v31, %v35
    %v38 = vadd.f32 %v30, %v36
    %v39 = vand.u32 2147483647, %v38
    %vm40 = vcmp.le.f32.partialorder %v39, 0.7853982
    %vm41 = vcmp.lt.s32.totalorder %v38, 0
    %v42 = vand.u32 %v38, 2139095040
    %v43 = vshrl.u32 %v42, 23
    %v44 = vsub.s32 %v43, 127
    %v45 = vand.u32 2147483647, %v38
    %v46 = vand.u32 %v45, 8388607
    %v47 = vor.u32 %v46, 8388608
    %v48 = vsub.s32 0, %v47
    %v49 = vadd.s32 %v44, 1
    %vm50 = vcmp.gt.s32.totalorder %v49, 0
    %v51 = vsel %vm50, %v49, 0
    %v52 = vshrl.u32 %v51, 5
    %v53 = vand.u32 %v51, 31
    %v54 = vsub.s32 32, %v53
    %v55 = vshrl.u32 683565275, %v54
    %v56 = vshll.u32 683565275, %v53
    %v57 = vshrl.u32 2475754826, %v54
    %v58 = vor.u32 %v56, %v57
    %v59 = vshll.u32 2475754826, %v53
    %v60 = vshrl.u32 2131351028, %v54
    %v61 = vor.u32 %v59, %v60
    %v62 = vshll.u32 2131351028, %v53
    %v63 = vshrl.u32 2102212464, %v54
    %v64 = vor.u32 %v62, %v63
    %v65 = vshll.u32 2102212464, %v53
    %v66 = vshrl.u32 920167782, %v54
    %v67 = vor.u32 %v65, %v66
    %v68 = vshll.u32 920167782, %v53
    %v69 = vshrl.u32 1326507024, %v54
    %v70 = vor.u32 %v68, %v69
    %vm71 = vcmp.lt.s32.totalorder %v52, 1
    %vm72 = vcmp.lt.s32.totalorder %v52, 2
    %vm73 = vcmp.lt.s32.totalorder %v52, 3
    %vm74 = vcmp.lt.s32.totalorder %v52, 4
    %v75 = vsel %vm71, %v55, %v58
    %v76 = vsel %vm74, %v64, 2102212464
    %v77 = vsel %vm73, %v61, %v76
    %v78 = vsel %vm72, %v75, %v77
    %v79 = vsel %vm71, %v58, %v61
    %v80 = vsel %vm74, %v67, 920167782
    %v81 = vsel %vm73, %v64, %v80
    %v82 = vsel %vm72, %v79, %v81
    %v83 = vsel %vm71, %v61, %v64
    %v84 = vsel %vm74, %v70, 1326507024
    %v85 = vsel %vm73, %v67, %v84
    %v86 = vsel %vm72, %v83, %v85
    %v87 = vshll.u32 %v47, 8
    %v88 = vmul.u32.u64.compose %v87, %v86
    %v89 = vextract.low.u32 %v88
    %v90 = vextract.high.u32 %v88
    %v91 = vmul.u32.u64.compose %v87, %v82
    %v92 = vextract.low.u32 %v91
    %v93 = vextract.high.u32 %v91
    %v94 = vmul.u32 %v87, %v78
    %v95 = vadd.s32 %v90, %v92
    %vm96 = vc.u32 %v90, %v92
    %v97 = vadd.s32 %v93, 1
    %v98 = vsel %vm96, %v97, %v93
    %v99 = vadd.s32 %v94, %v98
    %v100 = vadd.s32 %v99, 536870912
    %v101 = vshrl.u32 %v100, 30
    %v102 = vshll.u32 %v101, 30
    %v103 = vsub.s32 %v99, %v102
    %vm104 = vcmp.lt.s32.totalorder %v103, 0
    %v105 = vsub.s32 0, %v103
    %v106 = vsel %vm104, %v105, %v103
    %v107 = vclz %v106
    %v108 = vsub.s32 %v107, 2
    %vm109 = vcmp.gt.s32.totalorder 0, %v108
    %v110 = vsel %vm109, 0, %v108
    %v111 = vsub.s32 32, %v110
    %v112 = vshll.u32 %v103, %v110
    %v113 = vshrl.u32 %v95, %v111
    %v114 = vor.u32 %v112, %v113
    %v115 = vsub.s32 4294967266, %v110
    %v116 = vadd.s32 %v115, 127
    %v117 = vshll.u32 %v116, 23
    %v118 = vor.u32 4788187, %v117
    %v119 = vand.u32 2147483647, %v118
    %v121 = vcvt.s32.f32 %v114
    %v122 = vmul.f32 %v121, %v119
    %v123 = vxor.u32 %v122, 2147483648
    %v124 = vsel %vm41, %v123, %v122
    %v125 = vsub.s32 4, %v101
    %v126 = vsel %vm41, %v125, %v101
    %v127 = vsel %vm40, %v38, %v124
    %v128 = vsel %vm40, 0, %v126
    %v129 = vcosq.f32.pop %v127
    %v130 = vsinq.f32.pop %v127
    %vm131 = vweird.f32 %v38
    %v132 = vadd.s32 %v128, 3
    %v133 = vand.u32 %v132, 3
    %vm134 = vcmp.lt.s32.totalorder %v133, 2
    %vm135 = vcmp.eq.s32.totalorder %v133, 0
    %v136 = vxor.u32 %v130, 2147483648
    %v137 = vsel %vm135, %v129, %v136
    %vm138 = vcmp.eq.s32.totalorder %v133, 2
    %v139 = vxor.u32 %v129, 2147483648
    %v140 = vsel %vm138, %v139, %v130
    %v141 = vsel %vm134, %v137, %v140
    %v142 = vsel %vm131, nan, %v141
    %vm143 = vcmask 261120
    %144 = vst.msk [vmem:[#allocation2] sm:$0xff] %vm143, %v142
    // Predicated region
    $region14: #{tpu_custom_call.1} parent=1 // pred_check
      _
    $region15: #{tpu_custom_call.1} parent=1 // pred_check_branch
      %146 = sbr.rel (0) target = $region17
    $region16: #{tpu_custom_call.1} parent=1 // pred_region
      %s148 = ssub.s32 128, 128
      %149 = vsyncadd [#allocation3], %s148
      %s151 = sshll.u32 [#allocation2], 4
      %s152 = int_to_ptr.vmem [resolvable:$true] %s151
      %154 = dma.vmem_to_hbm [thread:$0]  %s152, 128, %s3, [#allocation3]
    $region17: #{tpu_custom_call.1} parent=1 // pred_fallthru
      _
    // Predicated region
    $region18: #{tpu_custom_call.1} parent=1 // pred_check
      _
    $region19: #{tpu_custom_call.1} parent=1 // pred_check_branch
      %156 = sbr.rel (0) target = $region21
    $region20: #{tpu_custom_call.1} parent=1 // pred_region
      %157 = dma.done [#allocation3], 128
    $region21: #{tpu_custom_call.1} parent=1 // pred_fallthru
      _
    %158 = vsyncpa [#allocation3], 1

</llo_original>
